<compile_context>
chip_gen: v7x
topology: tpu7x:2x2x1
jax: 0.10.0
libtpu: 0.0.40
codegen_flags: <defaults>
</compile_context>

<pallas_src>
import functools

import jax
import jax.numpy as jnp
from jax.experimental import pallas as pl
from jax.experimental.pallas import tpu as pltpu

PAD = 128  # common padded feature width (lane-dense, MXU-friendly)


def fnn_fused_kernel(x_ref, w_ref, pb_ref, o_ref, *, n_layers: int, eps: float):
    """One grid step = one independent minibatch group.

    x_ref : bf16 [1, batch, P]   (feature-padded, pre-cast in wrapper)
    w_ref : bf16 [n_layers, P, P] stacked W^T (zero-padded)
    pb_ref: f32  [n_layers, 2, P] packed (gamma, beta) per layer
    o_ref : f32  [1, batch, P]
    """
    y = x_ref[0]                                  # bf16 [batch, P]
    inv_n = 1.0 / y.shape[0]

    for i in range(n_layers):
        # Linear on the MXU: bf16 x bf16 -> f32 accumulate. Bias dropped (see top).
        y = jnp.dot(y, w_ref[i], preferred_element_type=jnp.float32)  # f32 [batch, P]

        # BatchNorm1d (training mode), single pass:
        # two independent cross-sublane (XLU) reductions, then folded affine.
        s1 = jnp.sum(y, axis=0, keepdims=True)        # [1, P]
        s2 = jnp.sum(y * y, axis=0, keepdims=True)    # [1, P]
        mean = s1 * inv_n
        var = s2 * inv_n - mean * mean                # biased variance (E[x^2]-mean^2)

        pb = pb_ref[i]                                # f32 [2, P]
        gamma = pb[0:1, :]
        beta = pb[1:2, :]
        scale = gamma * jax.lax.rsqrt(var + eps)      # [1, P]
        shift = beta - mean * scale                   # [1, P]
        y = y * scale + shift                         # [batch, P]

        if i < n_layers - 1:
            y = jnp.maximum(y, 0.0)                   # ReLU between blocks only
            y = y.astype(jnp.bfloat16)                # next MXU operand

    o_ref[0] = y.astype(o_ref.dtype)


def fnn_forward(x, w_stack, pb_stack, layer_sizes, *, eps: float = 1e-5):
    """x: f32 [groups, batch, in_features] (independent minibatch groups).
    Returns f32 [groups, batch, out_features]."""
    groups, batch, in_f = x.shape
    n_layers, _, P = w_stack.shape
    out_f = layer_sizes[-1]

    # Pad features to P and cast to bf16 in the wrapper (half the x DMA bytes).
    x_p = jnp.zeros((groups, batch, P), jnp.bfloat16)
    x_p = x_p.at[:, :, :in_f].set(x.astype(jnp.bfloat16))

    kernel = functools.partial(fnn_fused_kernel, n_layers=n_layers, eps=eps)
    out_p = pl.pallas_call(
        kernel,
        out_shape=jax.ShapeDtypeStruct((groups, batch, P), jnp.float32),
        grid=(groups,),
        in_specs=[
            pl.BlockSpec((1, batch, P), lambda g: (g, 0, 0)),          # per-group x
            pl.BlockSpec((n_layers, P, P), lambda g: (0, 0, 0)),       # resident weights
            pl.BlockSpec((n_layers, 2, P), lambda g: (0, 0, 0)),       # resident gamma/beta
        ],
        out_specs=pl.BlockSpec((1, batch, P), lambda g: (g, 0, 0)),    # lane-dense store
        compiler_params=pltpu.CompilerParams(
            dimension_semantics=("parallel",)),                         # v7x: 2 TCs
    )(x_p, w_stack, pb_stack)
    return out_p[:, :, :out_f]


def init_fnn_params(key, layer_sizes, pad: int = PAD):
    """He init (kaiming_normal_, relu, fan_in) for Linear weights (bias zero ->
    absorbed by train-mode BN), BN gamma=1 / beta=0 — matching the PyTorch
    __init__.  Everything zero-padded to `pad` and packed into two stacks."""
    n_layers = len(layer_sizes) - 1
    w_stack = jnp.zeros((n_layers, pad, pad), jnp.bfloat16)
    pb_stack = jnp.zeros((n_layers, 2, pad), jnp.float32)
    for i in range(n_layers):
        in_size, out_size = layer_sizes[i], layer_sizes[i + 1]
        key, wkey = jax.random.split(key)
        std = jnp.sqrt(2.0 / in_size)  # kaiming_normal_(nonlinearity='relu'), fan_in
        w = jax.random.normal(wkey, (out_size, in_size), jnp.float32) * std
        w_stack = w_stack.at[i, :in_size, :out_size].set(w.T.astype(jnp.bfloat16))
        pb_stack = pb_stack.at[i, 0, :].set(1.0)   # gamma (pad gamma=1 is harmless)
        # beta row stays 0 (pad beta MUST be 0 so padded features stay exactly 0)
    return w_stack, pb_stack


def fnn_reference(x, w_stack, pb_stack, layer_sizes, *, eps: float = 1e-5):
    """Pure-JAX reference with the SAME numerics as the kernel (bf16 matmul
    operands, f32 accumulate/BN) so the comparison is tight, not tolerance-hidden."""
    G, B, in_f = x.shape
    n_layers, _, P = w_stack.shape
    y = jnp.zeros((G, B, P), jnp.float32).at[:, :, :in_f].set(x).astype(jnp.bfloat16)
    for i in range(n_layers):
        y = jnp.dot(y, w_stack[i], preferred_element_type=jnp.float32)
        mean = jnp.mean(y, axis=1, keepdims=True)
        var = jnp.mean((y - mean) ** 2, axis=1, keepdims=True)
        gamma = pb_stack[i, 0][None, None, :]
        beta = pb_stack[i, 1][None, None, :]
        y = (y - mean) * jax.lax.rsqrt(var + eps) * gamma + beta
        if i < n_layers - 1:
            y = jnp.maximum(y, 0.0).astype(jnp.bfloat16)
    return y[:, :, :layer_sizes[-1]]


if __name__ == "__main__":
    layer_sizes = [16, 32, 32, 8]   # FNN(layer_sizes, activation=nn.ReLU())
    batch = 8                       # multiple of 8 -> clean sublane mapping
    groups = 2                      # independent minibatches per call (parallel grid)

    key = jax.random.PRNGKey(0)
    key, xkey = jax.random.split(key)
    x = jax.random.normal(xkey, (groups, batch, layer_sizes[0]), jnp.float32)

    w_stack, pb_stack = init_fnn_params(key, layer_sizes)

    out = fnn_forward(x, w_stack, pb_stack, layer_sizes)
    jax.block_until_ready(out)

    assert out.shape == (groups, batch, layer_sizes[-1])
    ref = fnn_reference(x, w_stack, pb_stack, layer_sizes)
    assert bool(jnp.all(jnp.isfinite(out)))
    assert bool(jnp.allclose(out, ref, rtol=5e-2, atol=5e-2)), "mismatch vs reference"
    print("KERNEL_OK")
</pallas_src>

<mosaic_0001>
module attributes {stable_mosaic.version = 11 : i64} {
  func.func @fnn_fused_kernel(%arg0: i32, %arg1: memref<1x8x128xbf16, #tpu.memory_space<vmem>>, %arg2: memref<3x128x128xbf16, #tpu.memory_space<vmem>>, %arg3: memref<3x2x128xf32, #tpu.memory_space<vmem>>, %arg4: memref<1x8x128xf32, #tpu.memory_space<vmem>>) attributes {dimension_semantics = [#tpu.dimension_semantics<parallel>], iteration_bounds = array<i64: 2>, scalar_prefetch = 0 : i64, scratch_operands = 0 : i64, tpu.core_type = #tpu.core_type<tc>, window_params = [{transform_indices = @transform_0, window_bounds = array<i64: 1, 8, 128>}, {pipeline_mode = #tpu.pipeline_mode<synchronous>, transform_indices = @transform_1, window_bounds = array<i64: 3, 128, 128>}, {pipeline_mode = #tpu.pipeline_mode<synchronous>, transform_indices = @transform_2, window_bounds = array<i64: 3, 2, 128>}, {transform_indices = @transform_3, window_bounds = array<i64: 1, 8, 128>}]} {
    %c0 = arith.constant 0 : index
    %c0_0 = arith.constant 0 : index
    %c0_1 = arith.constant 0 : index
    %0 = vector.load %arg1[%c0, %c0_0, %c0_1] : memref<1x8x128xbf16, #tpu.memory_space<vmem>>, vector<1x8x128xbf16>
    %1 = vector.shape_cast %0 : vector<1x8x128xbf16> to vector<8x128xbf16>
    %c0_2 = arith.constant 0 : index
    %c0_3 = arith.constant 0 : index
    %c0_4 = arith.constant 0 : index
    %2 = vector.load %arg2[%c0_2, %c0_3, %c0_4] : memref<3x128x128xbf16, #tpu.memory_space<vmem>>, vector<1x128x128xbf16>
    %3 = vector.shape_cast %2 : vector<1x128x128xbf16> to vector<128x128xbf16>
    %cst = arith.constant dense<0.000000e+00> : vector<8x128xf32>
    %4 = tpu.matmul %1, %3, %cst {dimension_numbers = #tpu.dot_dimension_numbers<[1], [0], [0], [1], [0, 0, 1, 1], [], []>} : vector<8x128xbf16>, vector<128x128xbf16>, vector<8x128xf32> -> vector<8x128xf32>
    %cst_5 = arith.constant dense<0.000000e+00> : vector<128xf32>
    %5 = vector.multi_reduction <add>, %4, %cst_5 [0] : vector<8x128xf32> to vector<128xf32>
    %6 = vector.shape_cast %5 : vector<128xf32> to vector<1x128xf32>
    %7 = arith.mulf %4, %4 : vector<8x128xf32>
    %cst_6 = arith.constant dense<0.000000e+00> : vector<128xf32>
    %8 = vector.multi_reduction <add>, %7, %cst_6 [0] : vector<8x128xf32> to vector<128xf32>
    %9 = vector.shape_cast %8 : vector<128xf32> to vector<1x128xf32>
    %cst_7 = arith.constant 1.250000e-01 : f32
    %10 = vector.broadcast %cst_7 : f32 to vector<1x128xf32>
    %11 = arith.mulf %6, %10 : vector<1x128xf32>
    %cst_8 = arith.constant 1.250000e-01 : f32
    %12 = vector.broadcast %cst_8 : f32 to vector<1x128xf32>
    %13 = arith.mulf %9, %12 : vector<1x128xf32>
    %14 = arith.mulf %11, %11 : vector<1x128xf32>
    %15 = arith.subf %13, %14 : vector<1x128xf32>
    %c0_9 = arith.constant 0 : index
    %c0_10 = arith.constant 0 : index
    %c0_11 = arith.constant 0 : index
    %16 = vector.load %arg3[%c0_9, %c0_10, %c0_11] : memref<3x2x128xf32, #tpu.memory_space<vmem>>, vector<1x2x128xf32>
    %17 = vector.shape_cast %16 : vector<1x2x128xf32> to vector<2x128xf32>
    %18 = vector.extract_strided_slice %17 {offsets = [0, 0], sizes = [1, 128], strides = [1, 1]} : vector<2x128xf32> to vector<1x128xf32>
    %19 = vector.extract_strided_slice %17 {offsets = [1, 0], sizes = [1, 128], strides = [1, 1]} : vector<2x128xf32> to vector<1x128xf32>
    %cst_12 = arith.constant 9.99999974E-6 : f32
    %20 = vector.broadcast %cst_12 : f32 to vector<1x128xf32>
    %21 = arith.addf %15, %20 : vector<1x128xf32>
    %22 = math.rsqrt %21 : vector<1x128xf32>
    %23 = arith.mulf %18, %22 : vector<1x128xf32>
    %24 = arith.mulf %11, %23 : vector<1x128xf32>
    %25 = arith.subf %19, %24 : vector<1x128xf32>
    %26 = vector.broadcast %23 : vector<1x128xf32> to vector<8x128xf32>
    %27 = arith.mulf %4, %26 : vector<8x128xf32>
    %28 = vector.broadcast %25 : vector<1x128xf32> to vector<8x128xf32>
    %29 = arith.addf %27, %28 : vector<8x128xf32>
    %cst_13 = arith.constant 0.000000e+00 : f32
    %30 = vector.broadcast %cst_13 : f32 to vector<8x128xf32>
    %31 = arith.maximumf %29, %30 : vector<8x128xf32>
    %32 = arith.truncf %31 : vector<8x128xf32> to vector<8x128xbf16>
    %c1 = arith.constant 1 : index
    %c0_14 = arith.constant 0 : index
    %c0_15 = arith.constant 0 : index
    %33 = vector.load %arg2[%c1, %c0_14, %c0_15] : memref<3x128x128xbf16, #tpu.memory_space<vmem>>, vector<1x128x128xbf16>
    %34 = vector.shape_cast %33 : vector<1x128x128xbf16> to vector<128x128xbf16>
    %cst_16 = arith.constant dense<0.000000e+00> : vector<8x128xf32>
    %35 = tpu.matmul %32, %34, %cst_16 {dimension_numbers = #tpu.dot_dimension_numbers<[1], [0], [0], [1], [0, 0, 1, 1], [], []>} : vector<8x128xbf16>, vector<128x128xbf16>, vector<8x128xf32> -> vector<8x128xf32>
    %cst_17 = arith.constant dense<0.000000e+00> : vector<128xf32>
    %36 = vector.multi_reduction <add>, %35, %cst_17 [0] : vector<8x128xf32> to vector<128xf32>
    %37 = vector.shape_cast %36 : vector<128xf32> to vector<1x128xf32>
    %38 = arith.mulf %35, %35 : vector<8x128xf32>
    %cst_18 = arith.constant dense<0.000000e+00> : vector<128xf32>
    %39 = vector.multi_reduction <add>, %38, %cst_18 [0] : vector<8x128xf32> to vector<128xf32>
    %40 = vector.shape_cast %39 : vector<128xf32> to vector<1x128xf32>
    %cst_19 = arith.constant 1.250000e-01 : f32
    %41 = vector.broadcast %cst_19 : f32 to vector<1x128xf32>
    %42 = arith.mulf %37, %41 : vector<1x128xf32>
    %cst_20 = arith.constant 1.250000e-01 : f32
    %43 = vector.broadcast %cst_20 : f32 to vector<1x128xf32>
    %44 = arith.mulf %40, %43 : vector<1x128xf32>
    %45 = arith.mulf %42, %42 : vector<1x128xf32>
    %46 = arith.subf %44, %45 : vector<1x128xf32>
    %c1_21 = arith.constant 1 : index
    %c0_22 = arith.constant 0 : index
    %c0_23 = arith.constant 0 : index
    %47 = vector.load %arg3[%c1_21, %c0_22, %c0_23] : memref<3x2x128xf32, #tpu.memory_space<vmem>>, vector<1x2x128xf32>
    %48 = vector.shape_cast %47 : vector<1x2x128xf32> to vector<2x128xf32>
    %49 = vector.extract_strided_slice %48 {offsets = [0, 0], sizes = [1, 128], strides = [1, 1]} : vector<2x128xf32> to vector<1x128xf32>
    %50 = vector.extract_strided_slice %48 {offsets = [1, 0], sizes = [1, 128], strides = [1, 1]} : vector<2x128xf32> to vector<1x128xf32>
    %cst_24 = arith.constant 9.99999974E-6 : f32
    %51 = vector.broadcast %cst_24 : f32 to vector<1x128xf32>
    %52 = arith.addf %46, %51 : vector<1x128xf32>
    %53 = math.rsqrt %52 : vector<1x128xf32>
    %54 = arith.mulf %49, %53 : vector<1x128xf32>
    %55 = arith.mulf %42, %54 : vector<1x128xf32>
    %56 = arith.subf %50, %55 : vector<1x128xf32>
    %57 = vector.broadcast %54 : vector<1x128xf32> to vector<8x128xf32>
    %58 = arith.mulf %35, %57 : vector<8x128xf32>
    %59 = vector.broadcast %56 : vector<1x128xf32> to vector<8x128xf32>
    %60 = arith.addf %58, %59 : vector<8x128xf32>
    %cst_25 = arith.constant 0.000000e+00 : f32
    %61 = vector.broadcast %cst_25 : f32 to vector<8x128xf32>
    %62 = arith.maximumf %60, %61 : vector<8x128xf32>
    %63 = arith.truncf %62 : vector<8x128xf32> to vector<8x128xbf16>
    %c2 = arith.constant 2 : index
    %c0_26 = arith.constant 0 : index
    %c0_27 = arith.constant 0 : index
    %64 = vector.load %arg2[%c2, %c0_26, %c0_27] : memref<3x128x128xbf16, #tpu.memory_space<vmem>>, vector<1x128x128xbf16>
    %65 = vector.shape_cast %64 : vector<1x128x128xbf16> to vector<128x128xbf16>
    %cst_28 = arith.constant dense<0.000000e+00> : vector<8x128xf32>
    %66 = tpu.matmul %63, %65, %cst_28 {dimension_numbers = #tpu.dot_dimension_numbers<[1], [0], [0], [1], [0, 0, 1, 1], [], []>} : vector<8x128xbf16>, vector<128x128xbf16>, vector<8x128xf32> -> vector<8x128xf32>
    %cst_29 = arith.constant dense<0.000000e+00> : vector<128xf32>
    %67 = vector.multi_reduction <add>, %66, %cst_29 [0] : vector<8x128xf32> to vector<128xf32>
    %68 = vector.shape_cast %67 : vector<128xf32> to vector<1x128xf32>
    %69 = arith.mulf %66, %66 : vector<8x128xf32>
    %cst_30 = arith.constant dense<0.000000e+00> : vector<128xf32>
    %70 = vector.multi_reduction <add>, %69, %cst_30 [0] : vector<8x128xf32> to vector<128xf32>
    %71 = vector.shape_cast %70 : vector<128xf32> to vector<1x128xf32>
    %cst_31 = arith.constant 1.250000e-01 : f32
    %72 = vector.broadcast %cst_31 : f32 to vector<1x128xf32>
    %73 = arith.mulf %68, %72 : vector<1x128xf32>
    %cst_32 = arith.constant 1.250000e-01 : f32
    %74 = vector.broadcast %cst_32 : f32 to vector<1x128xf32>
    %75 = arith.mulf %71, %74 : vector<1x128xf32>
    %76 = arith.mulf %73, %73 : vector<1x128xf32>
    %77 = arith.subf %75, %76 : vector<1x128xf32>
    %c2_33 = arith.constant 2 : index
    %c0_34 = arith.constant 0 : index
    %c0_35 = arith.constant 0 : index
    %78 = vector.load %arg3[%c2_33, %c0_34, %c0_35] : memref<3x2x128xf32, #tpu.memory_space<vmem>>, vector<1x2x128xf32>
    %79 = vector.shape_cast %78 : vector<1x2x128xf32> to vector<2x128xf32>
    %80 = vector.extract_strided_slice %79 {offsets = [0, 0], sizes = [1, 128], strides = [1, 1]} : vector<2x128xf32> to vector<1x128xf32>
    %81 = vector.extract_strided_slice %79 {offsets = [1, 0], sizes = [1, 128], strides = [1, 1]} : vector<2x128xf32> to vector<1x128xf32>
    %cst_36 = arith.constant 9.99999974E-6 : f32
    %82 = vector.broadcast %cst_36 : f32 to vector<1x128xf32>
    %83 = arith.addf %77, %82 : vector<1x128xf32>
    %84 = math.rsqrt %83 : vector<1x128xf32>
    %85 = arith.mulf %80, %84 : vector<1x128xf32>
    %86 = arith.mulf %73, %85 : vector<1x128xf32>
    %87 = arith.subf %81, %86 : vector<1x128xf32>
    %88 = vector.broadcast %85 : vector<1x128xf32> to vector<8x128xf32>
    %89 = arith.mulf %66, %88 : vector<8x128xf32>
    %90 = vector.broadcast %87 : vector<1x128xf32> to vector<8x128xf32>
    %91 = arith.addf %89, %90 : vector<8x128xf32>
    %c0_37 = arith.constant 0 : index
    %c0_38 = arith.constant 0 : index
    %c0_39 = arith.constant 0 : index
    %92 = vector.load %arg4[%c0_37, %c0_38, %c0_39] : memref<1x8x128xf32, #tpu.memory_space<vmem>>, vector<1x8x128xf32>
    %93 = vector.shape_cast %92 : vector<1x8x128xf32> to vector<8x128xf32>
    %94 = vector.shape_cast %91 : vector<8x128xf32> to vector<1x8x128xf32>
    tpu.vector_store %arg4[%c0_37, %c0_38, %c0_39], %94 {strides = array<i32>} : memref<1x8x128xf32, #tpu.memory_space<vmem>>, vector<1x8x128xf32>,
    return
  }
  func.func @transform_0(%arg0: i32) -> (i32, i32, i32) {
    %c0_i32 = arith.constant 0 : i32
    %c0_i32_0 = arith.constant 0 : i32
    %c0_i32_1 = arith.constant 0 : i32
    return %arg0, %c0_i32, %c0_i32_0 : i32, i32, i32
  }
  func.func @transform_1(%arg0: i32) -> (i32, i32, i32) {
    %c0_i32 = arith.constant 0 : i32
    %c0_i32_0 = arith.constant 0 : i32
    %c0_i32_1 = arith.constant 0 : i32
    %c0_i32_2 = arith.constant 0 : i32
    return %c0_i32, %c0_i32_0, %c0_i32_1 : i32, i32, i32
  }
  func.func @transform_2(%arg0: i32) -> (i32, i32, i32) {
    %c0_i32 = arith.constant 0 : i32
    %c0_i32_0 = arith.constant 0 : i32
    %c0_i32_1 = arith.constant 0 : i32
    %c0_i32_2 = arith.constant 0 : i32
    return %c0_i32, %c0_i32_0, %c0_i32_1 : i32, i32, i32
  }
  func.func @transform_3(%arg0: i32) -> (i32, i32, i32) {
    %c0_i32 = arith.constant 0 : i32
    %c0_i32_0 = arith.constant 0 : i32
    %c0_i32_1 = arith.constant 0 : i32
    return %arg0, %c0_i32, %c0_i32_0 : i32, i32, i32
  }
}

</mosaic_0001>

<llo_original>
// kernel: tpu_custom_call.1
$region0: #{tpu_custom_call.1}
  #allocation0 [shape = 'u32[]', space=smem, size = 0x4, offset = 0x4, fixed_abs, tag = 'smem constant byte address 0x4 - core index']
  #allocation1 [shape = 'u32[144,128]{1,0:T(1,128)}', space=vmem, size = 0x12000, scoped, tag = 'internal scratch']
  %s0 = inlined_call_operand.hbm [shape: bf16[2,8,128], index: 0, kind: input, shape index: {}]
  %s1 = inlined_call_operand.hbm [shape: bf16[3,128,128], index: 1, kind: input, shape index: {}]
  %s2 = inlined_call_operand.vmem [shape: f32[3,2,128], index: 2, kind: input, shape index: {}]
  %s3 = inlined_call_operand.hbm [shape: f32[2,8,128], index: 3, kind: output, shape index: {}]
  %s4 = sld [smem:[#allocation0]]
  $region53: #{tpu_custom_call.1} parent=0
    _
  %s6 = ssub.s32 1, %s4
  %s7 = scalar_select 0, %s6, %s4
  $region1: #{tpu_custom_call.1} parent=0
    #allocation2 [shape = 'u8[4096]{0}', space=vmem, size = 0x1000, scoped, tag = 'input window, operand 0']
    #allocation3 [shape = 's32[2]{0}', space=sflag, size = 0x8, scoped, tag = 'scoped memory for tpu_custom_call.1']
    #allocation4 [shape = 's32[2]{0}', space=sflag, size = 0x8, scoped, tag = 'scoped memory for tpu_custom_call.1']
    #allocation5 [shape = 'u8[98304]{0}', space=vmem, size = 0x18000, scoped, tag = 'input window, operand 1, single buffered']
    #allocation6 [shape = 's32[1]{0}', space=sflag, size = 0x4, scoped, tag = 'scoped memory for tpu_custom_call.1']
    #allocation7 [shape = 'u8[8192]{0}', space=vmem, size = 0x2000, scoped, tag = 'output window, operand 0']
    %8 = vsyncpa [#allocation3], 0
    %s9 = scalar_lea.sflag [#allocation3], 1
    %10 = vsyncpa %s9, 0
    %11 = vsyncpa [#allocation6], 0
    %12 = vsyncpa [#allocation4], 0
    %s13 = scalar_lea.sflag [#allocation4], 1
    %14 = vsyncpa %s13, 0
    loop: start=0, step=1, limit=4
    $region2: #{tpu_custom_call.1} parent=1 // loop_pre_header
      _
    $region3: #{tpu_custom_call.1} parent=1 // loop_header
      %s16 = sphi 0, %s20
      %p17 = scmp.ge.s32.totalorder %s16, 4
      %s26 = sphi 0, %s28
      %s29 = sphi 0, %s26
      %s30 = sphi 0, %s29
      %s46 = sphi 0, %s30
      %s50 = sphi 0, %s50
      %s52 = sphi 0, %s50
      %s53 = sphi 0, %s52
      %s67 = sphi 0, %s53
      %s71 = sphi 0, %s71
      %s73 = sphi 0, %s71
      %s74 = sphi 0, %s73
      %s88 = sphi 0, %s74
      %s94 = sphi 0, %s96
      %s97 = sphi 0, %s94
      %s98 = sphi 0, %s97
      %s114 = sphi 0, %s98
    $region4: #{tpu_custom_call.1} parent=1 // loop_header_branch
      %19 = sbr.rel (%p17) target = $region8
    $region5: #{tpu_custom_call.1} parent=1 // loop_body
      %s21 = ssub.s32 %s16, 1
      %s22 = ssub.s32 %s16, 2
      %s23 = sadd.s32 %s16, 1
      %s24 = ssub.s32 %s16, %s23
      %p25 = scmp.eq.s32.totalorder %s24, 0
      %s27 = sadd.s32 %s26, 1
      %s28 = scalar_select %p25, %s26, %s27
      %p31 = pneg %p25
      %p32 = scmp.eq.s32.totalorder %s16, 1
      %p33 = por %p31, %p32
      %p34 = scmp.ne.s32.totalorder %s26, %s29
      %p35 = scmp.eq.s32.totalorder %s16, 0
      %p36 = por %p34, %p35
      %p37 = scmp.ne.s32.totalorder %s26, %s29
      %p38 = scmp.eq.s32.totalorder %s21, 1
      %p39 = por %p37, %p38
      %p40 = scmp.ne.s32.totalorder %s29, %s30
      %p41 = scmp.eq.s32.totalorder %s21, 0
      %p42 = por %p40, %p41
      %p43 = scmp.ne.s32.totalorder %s29, %s30
      %p44 = scmp.eq.s32.totalorder %s22, 1
      %p45 = por %p43, %p44
      %p47 = scmp.ne.s32.totalorder %s30, %s46
      %p48 = scmp.eq.s32.totalorder %s22, 0
      %p49 = por %p47, %p48
      %s51 = sadd.s32 %s50, 1
      %p54 = scmp.eq.s32.totalorder %s16, 1
      %p55 = scmp.ne.s32.totalorder %s50, %s52
      %p56 = scmp.eq.s32.totalorder %s16, 0
      %p57 = por %p55, %p56
      %p58 = scmp.ne.s32.totalorder %s50, %s52
      %p59 = scmp.eq.s32.totalorder %s21, 1
      %p60 = por %p58, %p59
      %p61 = scmp.ne.s32.totalorder %s52, %s53
      %p62 = scmp.eq.s32.totalorder %s21, 0
      %p63 = por %p61, %p62
      %p64 = scmp.ne.s32.totalorder %s52, %s53
      %p65 = scmp.eq.s32.totalorder %s22, 1
      %p66 = por %p64, %p65
      %p68 = scmp.ne.s32.totalorder %s53, %s67
      %p69 = scmp.eq.s32.totalorder %s22, 0
      %p70 = por %p68, %p69
      %s72 = sadd.s32 %s71, 1
      %p75 = scmp.eq.s32.totalorder %s16, 1
      %p76 = scmp.ne.s32.totalorder %s71, %s73
      %p77 = scmp.eq.s32.totalorder %s16, 0
      %p78 = por %p76, %p77
      %p79 = scmp.ne.s32.totalorder %s71, %s73
      %p80 = scmp.eq.s32.totalorder %s21, 1
      %p81 = por %p79, %p80
      %p82 = scmp.ne.s32.totalorder %s73, %s74
      %p83 = scmp.eq.s32.totalorder %s21, 0
      %p84 = por %p82, %p83
      %p85 = scmp.ne.s32.totalorder %s73, %s74
      %p86 = scmp.eq.s32.totalorder %s22, 1
      %p87 = por %p85, %p86
      %p89 = scmp.ne.s32.totalorder %s74, %s88
      %p90 = scmp.eq.s32.totalorder %s22, 0
      %p91 = por %p89, %p90
      %s92 = ssub.s32 %s16, %s23
      %p93 = scmp.eq.s32.totalorder %s92, 0
      %s95 = sadd.s32 %s94, 1
      %s96 = scalar_select %p93, %s94, %s95
      %p99 = pneg %p93
      %p100 = scmp.eq.s32.totalorder %s16, 1
      %p101 = por %p99, %p100
      %p102 = scmp.ne.s32.totalorder %s94, %s97
      %p103 = scmp.eq.s32.totalorder %s16, 0
      %p104 = por %p102, %p103
      %p105 = scmp.ne.s32.totalorder %s94, %s97
      %p106 = scmp.eq.s32.totalorder %s21, 1
      %p107 = por %p105, %p106
      %p108 = scmp.ne.s32.totalorder %s97, %s98
      %p109 = scmp.eq.s32.totalorder %s21, 0
      %p110 = por %p108, %p109
      %p111 = scmp.ne.s32.totalorder %s97, %s98
      %p112 = scmp.eq.s32.totalorder %s22, 1
      %p113 = por %p111, %p112
      %p115 = scmp.ne.s32.totalorder %s98, %s114
      %p116 = scmp.eq.s32.totalorder %s22, 0
      %p117 = por %p115, %p116
      %p118 = scmp.le.s32.totalorder 1, %s16
      %p119 = scmp.lt.s32.totalorder %s16, 3
      %p120 = pnand %p118, %p119
      %p121 = pneg %p120
      // Predicated region
      $region9: #{tpu_custom_call.1} parent=5 // pred_check
        _
      $region10: #{tpu_custom_call.1} parent=5 // pred_check_branch
        %123 = sbr.rel (%p120) target = $region12
      $region11: #{tpu_custom_call.1} parent=5 // pred_region
        %s124 = ssub.s32 %s16, 1
        // Predicated region
        $region13: #{tpu_custom_call.1} parent=11 // pred_check
          %p125 = pneg %p63
        $region14: #{tpu_custom_call.1} parent=11 // pred_check_branch
          %127 = sbr.rel (%p125) target = $region16
        $region15: #{tpu_custom_call.1} parent=11 // pred_region
          %s129 = ssub.s32 3072, 3072
          %130 = vsyncadd [#allocation6], %s129
          %s131 = sshll.u32 [#allocation5], 4
          %s132 = int_to_ptr.vmem [resolvable:$true] %s131
          %137 = dma.hbm_to_vmem [thread:$0]  %s1, 3072, %s132, [#allocation6], 64, 64, 4
        $region16: #{tpu_custom_call.1} parent=11 // pred_fallthru
          _
        // Predicated region
        $region17: #{tpu_custom_call.1} parent=11 // pred_check
          %p138 = pneg %p84
        $region18: #{tpu_custom_call.1} parent=11 // pred_check_branch
          %140 = sbr.rel (%p138) target = $region20
        $region19: #{tpu_custom_call.1} parent=11 // pred_region
          _
        $region20: #{tpu_custom_call.1} parent=11 // pred_fallthru
          _
      $region12: #{tpu_custom_call.1} parent=5 // pred_fallthru
        _
      %p141 = scmp.lt.s32.totalorder %s16, 2
      // Predicated region
      $region21: #{tpu_custom_call.1} parent=5 // pred_check
        %p142 = pneg %p141
      $region22: #{tpu_custom_call.1} parent=5 // pred_check_branch
        %144 = sbr.rel (%p142) target = $region24
      $region23: #{tpu_custom_call.1} parent=5 // pred_region
        // Predicated region
        $region25: #{tpu_custom_call.1} parent=23 // pred_check
          %p145 = pneg %p36
        $region26: #{tpu_custom_call.1} parent=23 // pred_check_branch
          %147 = sbr.rel (%p145) target = $region28
        $region27: #{tpu_custom_call.1} parent=23 // pred_region
          %s148 = sand.u32 %s26, 1
          %s149 = scalar_lea.sflag [#allocation3], %s148
          %s150 = sand.u32 %s26, 1
          %s151 = smul.addr %s150, 4
          %s152 = scalar_lea.vmem [#allocation2], %s151
          %s154 = ssub.s32 64, 64
          %155 = vsyncadd %s149, %s154
          %s156 = smul.addr %s16, 64
          %s157 = scalar_lea.hbm %s0, %s156
          %s159 = sshll.u32 %s152, 4
          %s160 = int_to_ptr.vmem [resolvable:$true] %s159
          %162 = dma.hbm_to_vmem [thread:$0]  %s157, 64, %s160, %s149
        $region28: #{tpu_custom_call.1} parent=23 // pred_fallthru
          _
      $region24: #{tpu_custom_call.1} parent=5 // pred_fallthru
        _
      %p163 = scmp.le.s32.totalorder 1, %s16
      %p164 = scmp.lt.s32.totalorder %s16, 3
      %p165 = pnand %p163, %p164
      %p166 = pneg %p165
      // Predicated region
      $region29: #{tpu_custom_call.1} parent=5 // pred_check
        _
      $region30: #{tpu_custom_call.1} parent=5 // pred_check_branch
        %168 = sbr.rel (%p165) target = $region32
      $region31: #{tpu_custom_call.1} parent=5 // pred_region
        %s169 = ssub.s32 %s16, 1
        %s170 = sand.u32 %s29, 1
        %s171 = scalar_lea.sflag [#allocation3], %s170
        %s172 = sand.u32 %s29, 1
        %s173 = smul.addr %s172, 4
        %s174 = scalar_lea.vmem [#allocation2], %s173
        // Predicated region
        $region33: #{tpu_custom_call.1} parent=31 // pred_check
          %p175 = pneg %p42
        $region34: #{tpu_custom_call.1} parent=31 // pred_check_branch
          %177 = sbr.rel (%p175) target = $region36
        $region35: #{tpu_custom_call.1} parent=31 // pred_region
          %178 = dma.done %s171, 64
        $region36: #{tpu_custom_call.1} parent=31 // pred_fallthru
          _
        // Predicated region
        $region37: #{tpu_custom_call.1} parent=31 // pred_check
          %p179 = pneg %p63
        $region38: #{tpu_custom_call.1} parent=31 // pred_check_branch
          %181 = sbr.rel (%p179) target = $region40
        $region39: #{tpu_custom_call.1} parent=31 // pred_region
          %182 = dma.done [#allocation6], 3072
        $region40: #{tpu_custom_call.1} parent=31 // pred_fallthru
          _
        %s183 = sand.u32 %s29, 1
        %s184 = scalar_lea.sflag [#allocation3], %s183
        %s185 = sand.u32 %s29, 1
        %s186 = smul.addr %s185, 4
        %s187 = scalar_lea.vmem [#allocation2], %s186
        %p188 = pneg %p42
        %p189 = pneg %p39
        %p190 = pneg %p63
        %p191 = pneg %p60
        %p192 = pneg %p84
        %p193 = pneg %p81
        %p194 = pneg %p110
        %p195 = pneg %p107
        %s196 = sand.u32 %s97, 1
        %s197 = scalar_lea.sflag [#allocation4], %s196
        %s198 = sand.u32 %s97, 1
        %s199 = smul.addr %s198, 8
        %s200 = scalar_lea.vmem [#allocation7], %s199
        %v202 = vld [vmem:[%s174] sm:$0xf]
        %v203 = vld [vmem:[#allocation5] sm:$0xf]
        %v204 = vld [vmem:[#allocation5 + $0x4] sm:$0xf]
        %v205 = vld [vmem:[#allocation5 + $0x8] sm:$0xf]
        %v206 = vld [vmem:[#allocation5 + $0xc] sm:$0xf]
        %v207 = vld [vmem:[#allocation5 + $0x10] sm:$0xf]
        %v208 = vld [vmem:[#allocation5 + $0x14] sm:$0xf]
        %v209 = vld [vmem:[#allocation5 + $0x18] sm:$0xf]
        %v210 = vld [vmem:[#allocation5 + $0x1c] sm:$0xf]
        %v211 = vld [vmem:[#allocation5 + $0x20] sm:$0xf]
        %v212 = vld [vmem:[#allocation5 + $0x24] sm:$0xf]
        %v213 = vld [vmem:[#allocation5 + $0x28] sm:$0xf]
        %v214 = vld [vmem:[#allocation5 + $0x2c] sm:$0xf]
        %v215 = vld [vmem:[#allocation5 + $0x30] sm:$0xf]
        %v216 = vld [vmem:[#allocation5 + $0x34] sm:$0xf]
        %v217 = vld [vmem:[#allocation5 + $0x38] sm:$0xf]
        %v218 = vld [vmem:[#allocation5 + $0x3c] sm:$0xf]
        %v235 = vunpack.c.l.b16 %v203
        %v236 = vunpack.c.l.b16 %v204
        %v237 = vunpack.c.l.b16 %v205
        %v238 = vunpack.c.l.b16 %v206
        %v239 = vunpack.c.l.b16 %v207
        %v240 = vunpack.c.l.b16 %v208
        %v241 = vunpack.c.l.b16 %v209
        %v242 = vunpack.c.l.b16 %v210
        %v243 = vunpack.c.l.b16 %v211
        %v244 = vunpack.c.l.b16 %v212
        %v245 = vunpack.c.l.b16 %v213
        %v246 = vunpack.c.l.b16 %v214
        %v247 = vunpack.c.l.b16 %v215
        %v248 = vunpack.c.l.b16 %v216
        %v249 = vunpack.c.l.b16 %v217
        %v250 = vunpack.c.l.b16 %v218
        %v251 = vpack.c.b16 %v236, %v235
        %v252 = vpack.c.b16 %v238, %v237
        %v253 = vpack.c.b16 %v240, %v239
        %v254 = vpack.c.b16 %v242, %v241
        %v255 = vpack.c.b16 %v244, %v243
        %v256 = vpack.c.b16 %v246, %v245
        %v257 = vpack.c.b16 %v248, %v247
        %v258 = vpack.c.b16 %v250, %v249
        %267 = vmatprep.subr.bf16.mxu0 0
        %268 = vmatpush1.bf16.msra.mxu0 %v251
        %269 = vmatprep.subr.bf16.mxu0 0
        %270 = vmatpush1.bf16.msra.mxu0 %v252
        %271 = vmatprep.subr.bf16.mxu0 0
        %272 = vmatpush1.bf16.msra.mxu0 %v253
        %273 = vmatprep.subr.bf16.mxu0 0
        %274 = vmatpush1.bf16.msra.mxu0 %v254
        %275 = vmatprep.subr.bf16.mxu0 0
        %276 = vmatpush1.bf16.msra.mxu0 %v255
        %277 = vmatprep.subr.bf16.mxu0 0
        %278 = vmatpush1.bf16.msra.mxu0 %v256
        %279 = vmatprep.subr.bf16.mxu0 0
        %280 = vmatpush1.bf16.msra.mxu0 %v257
        %281 = vmatprep.subr.bf16.mxu0 0
        %282 = vmatpush1.bf16.msra.mxu0 %v258
        %283 = vmatprep.subr.bf16.mxu0 0
        %284 = vmatpush1.bf16.msra.mxu0 0
        %285 = vmatprep.subr.bf16.mxu0 0
        %286 = vmatpush1.bf16.msra.mxu0 0
        %287 = vmatprep.subr.bf16.mxu0 0
        %288 = vmatpush1.bf16.msra.mxu0 0
        %289 = vmatprep.subr.bf16.mxu0 0
        %290 = vmatpush1.bf16.msra.mxu0 0
        %291 = vmatprep.subr.bf16.mxu0 0
        %292 = vmatpush1.bf16.msra.mxu0 0
        %293 = vmatprep.subr.bf16.mxu0 0
        %294 = vmatpush1.bf16.msra.mxu0 0
        %295 = vmatprep.subr.bf16.mxu0 0
        %296 = vmatpush1.bf16.msra.mxu0 0
        %297 = vmatprep.subr.bf16.mxu0 0
        %298 = vmatpush1.bf16.msra.mxu0 0
        %299 = vmatprep.mubr.bf16.mxu0 0
        %300 = vmatmul.mubr.bf16.gmra.mrb[0].mxu0 %v202
        %v301 = vpop.f32.mrb[0].mxu0
        %v302 = vadd.f32 0.0, %v301
        %v303 = vpop.f32.mrb[0].mxu0
        %v304 = vpop.f32.mrb[0].mxu0
        %v305 = vpop.f32.mrb[0].mxu0
        %306 = vdwg.mxu0
        %v307 = vrot.slane %v302, 4
        %v308 = vadd.f32 %v302, %v307
        %v309 = vrot.slane %v308, 2
        %v310 = vadd.f32 %v308, %v309
        %v311 = vrot.slane %v310, 1
        %v312 = vadd.f32 %v310, %v311
        %v313 = vmul.f32 %v302, %v302
        %v314 = vrot.slane %v313, 4
        %v315 = vadd.f32 %v313, %v314
        %v316 = vrot.slane %v315, 2
        %v317 = vadd.f32 %v315, %v316
        %v318 = vrot.slane %v317, 1
        %v319 = vadd.f32 %v317, %v318
        %v320 = vmul.f32 %v312, 0.125
        %v321 = vmul.f32 %v319, 0.125
        %v322 = vmul.f32 %v320, %v320
        %v323 = vsub.f32 %v321, %v322
        %v324 = vld [vmem:[%s2] sm:$0x3]
        %v325 = vadd.f32 %v323, 1e-05
        %v326 = vrsqrt.pop %v325
        %v327 = vmul.f32 %v324, %v326
        %v328 = vmul.f32 %v320, %v327
        %v330 = vrot.slane %v328, 7
        %v332 = vsub.f32 %v324, %v330
        %v333 = vlaneseq
        %v334 = vshrl.u32 %v333, 7
        %v335 = vsub.s32 0, %v334
        %v336 = vrot.slane %v327, %v335
        %v337 = vmul.f32 %v302, %v336
        %v338 = vlaneseq
        %v339 = vshrl.u32 %v338, 7
        %v340 = vsub.s32 1, %v339
        %v341 = vrot.slane %v332, %v340
        %v342 = vadd.f32 %v337, %v341
        %v343 = vmax.f32 %v342, 0.0
        %v344 = vpack.c.bf16 %v343, %v343
        %s345 = scalar_lea.vmem [#allocation5], 64
        %v346 = vld [vmem:[%s345] sm:$0xf]
        %v347 = vld [vmem:[%s345 + $0x4] sm:$0xf]
        %v348 = vld [vmem:[%s345 + $0x8] sm:$0xf]
        %v349 = vld [vmem:[%s345 + $0xc] sm:$0xf]
        %v350 = vld [vmem:[%s345 + $0x10] sm:$0xf]
        %v351 = vld [vmem:[%s345 + $0x14] sm:$0xf]
        %v352 = vld [vmem:[%s345 + $0x18] sm:$0xf]
        %v353 = vld [vmem:[%s345 + $0x1c] sm:$0xf]
        %v354 = vld [vmem:[%s345 + $0x20] sm:$0xf]
        %v355 = vld [vmem:[%s345 + $0x24] sm:$0xf]
        %v356 = vld [vmem:[%s345 + $0x28] sm:$0xf]
        %v357 = vld [vmem:[%s345 + $0x2c] sm:$0xf]
        %v358 = vld [vmem:[%s345 + $0x30] sm:$0xf]
        %v359 = vld [vmem:[%s345 + $0x34] sm:$0xf]
        %v360 = vld [vmem:[%s345 + $0x38] sm:$0xf]
        %v361 = vld [vmem:[%s345 + $0x3c] sm:$0xf]
        %v378 = vunpack.c.l.b16 %v346
        %v379 = vunpack.c.l.b16 %v347
        %v380 = vunpack.c.l.b16 %v348
        %v381 = vunpack.c.l.b16 %v349
        %v382 = vunpack.c.l.b16 %v350
        %v383 = vunpack.c.l.b16 %v351
        %v384 = vunpack.c.l.b16 %v352
        %v385 = vunpack.c.l.b16 %v353
        %v386 = vunpack.c.l.b16 %v354
        %v387 = vunpack.c.l.b16 %v355
        %v388 = vunpack.c.l.b16 %v356
        %v389 = vunpack.c.l.b16 %v357
        %v390 = vunpack.c.l.b16 %v358
        %v391 = vunpack.c.l.b16 %v359
        %v392 = vunpack.c.l.b16 %v360
        %v393 = vunpack.c.l.b16 %v361
        %v394 = vpack.c.b16 %v379, %v378
        %v395 = vpack.c.b16 %v381, %v380
        %v396 = vpack.c.b16 %v383, %v382
        %v397 = vpack.c.b16 %v385, %v384
        %v398 = vpack.c.b16 %v387, %v386
        %v399 = vpack.c.b16 %v389, %v388
        %v400 = vpack.c.b16 %v391, %v390
        %v401 = vpack.c.b16 %v393, %v392
        %410 = vmatprep.subr.bf16.mxu0 0
        %411 = vmatpush1.bf16.msra.mxu0 %v394
        %412 = vmatprep.subr.bf16.mxu0 0
        %413 = vmatpush1.bf16.msra.mxu0 %v395
        %414 = vmatprep.subr.bf16.mxu0 0
        %415 = vmatpush1.bf16.msra.mxu0 %v396
        %416 = vmatprep.subr.bf16.mxu0 0
        %417 = vmatpush1.bf16.msra.mxu0 %v397
        %418 = vmatprep.subr.bf16.mxu0 0
        %419 = vmatpush1.bf16.msra.mxu0 %v398
        %420 = vmatprep.subr.bf16.mxu0 0
        %421 = vmatpush1.bf16.msra.mxu0 %v399
        %422 = vmatprep.subr.bf16.mxu0 0
        %423 = vmatpush1.bf16.msra.mxu0 %v400
        %424 = vmatprep.subr.bf16.mxu0 0
        %425 = vmatpush1.bf16.msra.mxu0 %v401
        %426 = vmatprep.subr.bf16.mxu0 0
        %427 = vmatpush1.bf16.msra.mxu0 0
        %428 = vmatprep.subr.bf16.mxu0 0
        %429 = vmatpush1.bf16.msra.mxu0 0
        %430 = vmatprep.subr.bf16.mxu0 0
        %431 = vmatpush1.bf16.msra.mxu0 0
        %432 = vmatprep.subr.bf16.mxu0 0
        %433 = vmatpush1.bf16.msra.mxu0 0
        %434 = vmatprep.subr.bf16.mxu0 0
        %435 = vmatpush1.bf16.msra.mxu0 0
        %436 = vmatprep.subr.bf16.mxu0 0
        %437 = vmatpush1.bf16.msra.mxu0 0
        %438 = vmatprep.subr.bf16.mxu0 0
        %439 = vmatpush1.bf16.msra.mxu0 0
        %440 = vmatprep.subr.bf16.mxu0 0
        %441 = vmatpush1.bf16.msra.mxu0 0
        %442 = vmatprep.mubr.bf16.mxu0 0
        %443 = vmatmul.mubr.bf16.gmra.mrb[0].mxu0 %v344
        %v444 = vpop.f32.mrb[0].mxu0
        %v445 = vadd.f32 0.0, %v444
        %v446 = vpop.f32.mrb[0].mxu0
        %v447 = vpop.f32.mrb[0].mxu0
        %v448 = vpop.f32.mrb[0].mxu0
        %449 = vdwg.mxu0
        %v450 = vrot.slane %v445, 4
        %v451 = vadd.f32 %v445, %v450
        %v452 = vrot.slane %v451, 2
        %v453 = vadd.f32 %v451, %v452
        %v454 = vrot.slane %v453, 1
        %v455 = vadd.f32 %v453, %v454
        %v456 = vmul.f32 %v445, %v445
        %v457 = vrot.slane %v456, 4
        %v458 = vadd.f32 %v456, %v457
        %v459 = vrot.slane %v458, 2
        %v460 = vadd.f32 %v458, %v459
        %v461 = vrot.slane %v460, 1
        %v462 = vadd.f32 %v460, %v461
        %v463 = vmul.f32 %v455, 0.125
        %v464 = vmul.f32 %v462, 0.125
        %v465 = vmul.f32 %v463, %v463
        %v466 = vsub.f32 %v464, %v465
        %s467 = scalar_lea.vmem %s2, 2
        %v468 = vld [vmem:[%s467] sm:$0x3]
        %v469 = vadd.f32 %v466, 1e-05
        %v470 = vrsqrt.pop %v469
        %v471 = vmul.f32 %v468, %v470
        %v472 = vmul.f32 %v463, %v471
        %v474 = vrot.slane %v472, 7
        %v476 = vsub.f32 %v468, %v474
        %v477 = vlaneseq
        %v478 = vshrl.u32 %v477, 7
        %v479 = vsub.s32 0, %v478
        %v480 = vrot.slane %v471, %v479
        %v481 = vmul.f32 %v445, %v480
        %v482 = vlaneseq
        %v483 = vshrl.u32 %v482, 7
        %v484 = vsub.s32 1, %v483
        %v485 = vrot.slane %v476, %v484
        %v486 = vadd.f32 %v481, %v485
        %v487 = vmax.f32 %v486, 0.0
        %v488 = vpack.c.bf16 %v487, %v487
        %s489 = scalar_lea.vmem [#allocation5], 128
        %v490 = vld [vmem:[%s489] sm:$0xf]
        %v491 = vld [vmem:[%s489 + $0x4] sm:$0xf]
        %v492 = vld [vmem:[%s489 + $0x8] sm:$0xf]
        %v493 = vld [vmem:[%s489 + $0xc] sm:$0xf]
        %v494 = vld [vmem:[%s489 + $0x10] sm:$0xf]
        %v495 = vld [vmem:[%s489 + $0x14] sm:$0xf]
        %v496 = vld [vmem:[%s489 + $0x18] sm:$0xf]
        %v497 = vld [vmem:[%s489 + $0x1c] sm:$0xf]
        %v498 = vld [vmem:[%s489 + $0x20] sm:$0xf]
        %v499 = vld [vmem:[%s489 + $0x24] sm:$0xf]
        %v500 = vld [vmem:[%s489 + $0x28] sm:$0xf]
        %v501 = vld [vmem:[%s489 + $0x2c] sm:$0xf]
        %v502 = vld [vmem:[%s489 + $0x30] sm:$0xf]
        %v503 = vld [vmem:[%s489 + $0x34] sm:$0xf]
        %v504 = vld [vmem:[%s489 + $0x38] sm:$0xf]
        %v505 = vld [vmem:[%s489 + $0x3c] sm:$0xf]
        %v522 = vunpack.c.l.b16 %v490
        %v523 = vunpack.c.l.b16 %v491
        %v524 = vunpack.c.l.b16 %v492
        %v525 = vunpack.c.l.b16 %v493
        %v526 = vunpack.c.l.b16 %v494
        %v527 = vunpack.c.l.b16 %v495
        %v528 = vunpack.c.l.b16 %v496
        %v529 = vunpack.c.l.b16 %v497
        %v530 = vunpack.c.l.b16 %v498
        %v531 = vunpack.c.l.b16 %v499
        %v532 = vunpack.c.l.b16 %v500
        %v533 = vunpack.c.l.b16 %v501
        %v534 = vunpack.c.l.b16 %v502
        %v535 = vunpack.c.l.b16 %v503
        %v536 = vunpack.c.l.b16 %v504
        %v537 = vunpack.c.l.b16 %v505
        %v538 = vpack.c.b16 %v523, %v522
        %v539 = vpack.c.b16 %v525, %v524
        %v540 = vpack.c.b16 %v527, %v526
        %v541 = vpack.c.b16 %v529, %v528
        %v542 = vpack.c.b16 %v531, %v530
        %v543 = vpack.c.b16 %v533, %v532
        %v544 = vpack.c.b16 %v535, %v534
        %v545 = vpack.c.b16 %v537, %v536
        %554 = vmatprep.subr.bf16.mxu0 0
        %555 = vmatpush1.bf16.msra.mxu0 %v538
        %556 = vmatprep.subr.bf16.mxu0 0
        %557 = vmatpush1.bf16.msra.mxu0 %v539
        %558 = vmatprep.subr.bf16.mxu0 0
        %559 = vmatpush1.bf16.msra.mxu0 %v540
        %560 = vmatprep.subr.bf16.mxu0 0
        %561 = vmatpush1.bf16.msra.mxu0 %v541
        %562 = vmatprep.subr.bf16.mxu0 0
        %563 = vmatpush1.bf16.msra.mxu0 %v542
        %564 = vmatprep.subr.bf16.mxu0 0
        %565 = vmatpush1.bf16.msra.mxu0 %v543
        %566 = vmatprep.subr.bf16.mxu0 0
        %567 = vmatpush1.bf16.msra.mxu0 %v544
        %568 = vmatprep.subr.bf16.mxu0 0
        %569 = vmatpush1.bf16.msra.mxu0 %v545
        %570 = vmatprep.subr.bf16.mxu0 0
        %571 = vmatpush1.bf16.msra.mxu0 0
        %572 = vmatprep.subr.bf16.mxu0 0
        %573 = vmatpush1.bf16.msra.mxu0 0
        %574 = vmatprep.subr.bf16.mxu0 0
        %575 = vmatpush1.bf16.msra.mxu0 0
        %576 = vmatprep.subr.bf16.mxu0 0
        %577 = vmatpush1.bf16.msra.mxu0 0
        %578 = vmatprep.subr.bf16.mxu0 0
        %579 = vmatpush1.bf16.msra.mxu0 0
        %580 = vmatprep.subr.bf16.mxu0 0
        %581 = vmatpush1.bf16.msra.mxu0 0
        %582 = vmatprep.subr.bf16.mxu0 0
        %583 = vmatpush1.bf16.msra.mxu0 0
        %584 = vmatprep.subr.bf16.mxu0 0
        %585 = vmatpush1.bf16.msra.mxu0 0
        %586 = vmatprep.mubr.bf16.mxu0 0
        %587 = vmatmul.mubr.bf16.gmra.mrb[0].mxu0 %v488
        %v588 = vpop.f32.mrb[0].mxu0
        %v589 = vadd.f32 0.0, %v588
        %v590 = vpop.f32.mrb[0].mxu0
        %v591 = vpop.f32.mrb[0].mxu0
        %v592 = vpop.f32.mrb[0].mxu0
        %593 = vdwg.mxu0
        %v594 = vrot.slane %v589, 4
        %v595 = vadd.f32 %v589, %v594
        %v596 = vrot.slane %v595, 2
        %v597 = vadd.f32 %v595, %v596
        %v598 = vrot.slane %v597, 1
        %v599 = vadd.f32 %v597, %v598
        %v600 = vmul.f32 %v589, %v589
        %v601 = vrot.slane %v600, 4
        %v602 = vadd.f32 %v600, %v601
        %v603 = vrot.slane %v602, 2
        %v604 = vadd.f32 %v602, %v603
        %v605 = vrot.slane %v604, 1
        %v606 = vadd.f32 %v604, %v605
        %v607 = vmul.f32 %v599, 0.125
        %v608 = vmul.f32 %v606, 0.125
        %v609 = vmul.f32 %v607, %v607
        %v610 = vsub.f32 %v608, %v609
        %s611 = scalar_lea.vmem %s2, 4
        %v612 = vld [vmem:[%s611] sm:$0x3]
        %v613 = vadd.f32 %v610, 1e-05
        %v614 = vrsqrt.pop %v613
        %v615 = vmul.f32 %v612, %v614
        %v616 = vmul.f32 %v607, %v615
        %v618 = vrot.slane %v616, 7
        %v620 = vsub.f32 %v612, %v618
        %v621 = vlaneseq
        %v622 = vshrl.u32 %v621, 7
        %v623 = vsub.s32 0, %v622
        %v624 = vrot.slane %v615, %v623
        %v625 = vmul.f32 %v589, %v624
        %v626 = vlaneseq
        %v627 = vshrl.u32 %v626, 7
        %v628 = vsub.s32 1, %v627
        %v629 = vrot.slane %v620, %v628
        %v630 = vadd.f32 %v625, %v629
        %631 = vst [vmem:[%s200] sm:$0xff] %v630
        %s632 = sand.u32 %s97, 1
        %s633 = scalar_lea.sflag [#allocation4], %s632
        %s634 = sand.u32 %s97, 1
        %s635 = smul.addr %s634, 8
        %s636 = scalar_lea.vmem [#allocation7], %s635
        // Predicated region
        $region41: #{tpu_custom_call.1} parent=31 // pred_check
          %p637 = pneg %p107
        $region42: #{tpu_custom_call.1} parent=31 // pred_check_branch
          %639 = sbr.rel (%p637) target = $region44
        $region43: #{tpu_custom_call.1} parent=31 // pred_region
          %s641 = ssub.s32 128, 128
          %642 = vsyncadd %s633, %s641
          %s643 = smul.addr %s21, 128
          %s644 = scalar_lea.hbm %s3, %s643
          %s646 = sshll.u32 %s636, 4
          %s647 = int_to_ptr.vmem [resolvable:$true] %s646
          %649 = dma.vmem_to_hbm [thread:$0]  %s647, 128, %s644, %s633
        $region44: #{tpu_custom_call.1} parent=31 // pred_fallthru
          _
      $region32: #{tpu_custom_call.1} parent=5 // pred_fallthru
        _
      %p650 = scmp.le.s32.totalorder 2, %s16
      // Predicated region
      $region45: #{tpu_custom_call.1} parent=5 // pred_check
        %p651 = pneg %p650
      $region46: #{tpu_custom_call.1} parent=5 // pred_check_branch
        %653 = sbr.rel (%p651) target = $region48
      $region47: #{tpu_custom_call.1} parent=5 // pred_region
        %s654 = ssub.s32 %s16, 2
        // Predicated region
        $region49: #{tpu_custom_call.1} parent=47 // pred_check
          %p655 = pneg %p113
        $region50: #{tpu_custom_call.1} parent=47 // pred_check_branch
          %657 = sbr.rel (%p655) target = $region52
        $region51: #{tpu_custom_call.1} parent=47 // pred_region
          %s658 = sand.u32 %s98, 1
          %s659 = scalar_lea.sflag [#allocation4], %s658
          %s660 = sand.u32 %s98, 1
          %s661 = smul.addr %s660, 8
          %s662 = scalar_lea.vmem [#allocation7], %s661
          %663 = dma.done %s659, 128
        $region52: #{tpu_custom_call.1} parent=47 // pred_fallthru
          _
      $region48: #{tpu_custom_call.1} parent=5 // pred_fallthru
        _
    $region6: #{tpu_custom_call.1} parent=1 // loop_footer
      %s20 = sadd.s32 1, %s16
    $region7: #{tpu_custom_call.1} parent=1 // loop_footer_branch
      %15 = sbr.rel target = $region3
    $region8: #{tpu_custom_call.1} parent=1 // loop_exit
      _
    %664 = vsyncpa [#allocation3], 1
    %s665 = scalar_lea.sflag [#allocation3], 1
    %666 = vsyncpa %s665, 1
    %667 = vsyncpa [#allocation6], 1
    %668 = vsyncpa [#allocation4], 1
    %s669 = scalar_lea.sflag [#allocation4], 1
    %670 = vsyncpa %s669, 1

</llo_original>
